<compile_context>
chip_gen: v7x
topology: tpu7x:2x2x1
jax: 0.10.0
libtpu: 0.0.40
codegen_flags: <defaults>
</compile_context>

<pallas_src>
from functools import partial

import jax
import jax.numpy as jnp
import numpy as np
from jax.experimental import pallas as pl
from jax.experimental.pallas import tpu as pltpu


def _pick_row_tile(n_rows, row_bytes, target_bytes=2 * 1024 * 1024, align=16):
    """Row tile giving ~target_bytes per block, multiple of `align`, capped at n_rows."""
    rt = max(1, target_bytes // max(1, row_bytes))
    rt = max(align, (rt // align) * align)
    if rt >= n_rows:
        # A block equal to the full dimension is always a legal block shape.
        return n_rows
    return rt


def _sumsq_kernel(x_ref, part_ref, *, total_rows, row_tile):
    """Pass 1: per-tile partial sum of squares (parallel across grid steps).

    Each grid step writes its partial into lane/sublane (0,0) of its own
    (1, 8, 128) output block; the host sums the partials (tree reduction).
    Rows beyond `total_rows` (ragged tail block -> stale VMEM) are masked out.
    """
    i = pl.program_id(0)
    x = x_ref[...].astype(jnp.float32)
    rid = i * row_tile + jax.lax.broadcasted_iota(jnp.int32, x.shape, 0)
    xm = jnp.where(rid < total_rows, x, jnp.float32(0.0))
    s = jnp.sum(xm * xm)

    sub = jax.lax.broadcasted_iota(jnp.int32, part_ref.shape, 1)
    lane = jax.lax.broadcasted_iota(jnp.int32, part_ref.shape, 2)
    part_ref[...] = jnp.where((sub == 0) & (lane == 0), s, jnp.float32(0.0))


def _norm_kernel(to_norm_ref, x_ref, o_ref, *, inv_nm1, eps):
    """Pass 2: per-row mean / unbiased std, scaled by the global to_norm factor.

    to_norm_ref is a (1,) f32 scalar living in SMEM (sqrt already done host-side).
    """
    x = x_ref[...].astype(jnp.float32)
    mean = jnp.mean(x, axis=-1, keepdims=True)
    c = x - mean
    # torch.std defaults to the unbiased estimator (divide by N-1).
    var = jnp.sum(c * c, axis=-1, keepdims=True) * jnp.float32(inv_nm1)
    std = jnp.sqrt(var)
    # One reciprocal per row + one multiply per element (no per-element divide).
    row_scale = to_norm_ref[0] * pl.reciprocal(std + jnp.float32(eps), approx=False)
    o_ref[...] = (c * row_scale).astype(o_ref.dtype)


def layer_norm_avg(x, desired_avg, eps=1e-6,
                   target_block_bytes=2 * 1024 * 1024,
                   vmem_limit_bytes=32 * 1024 * 1024):
    features = x.shape[-1]
    orig_shape = x.shape
    x2 = x.reshape(-1, features)
    rows = x2.shape[0]
    itemsize = jnp.dtype(x.dtype).itemsize

    # ------------------ Pass 1: global sum(x**2), parallel per-tile partials ------------------
    n_elems = rows * features
    if features < 128 and n_elems % 128 == 0:
        # Sum of squares is row-agnostic -> use a lane-dense view (free reshape).
        xv = x2.reshape(n_elems // 128, 128)
    else:
        xv = x2
    v_rows, v_cols = xv.shape

    rt1 = _pick_row_tile(v_rows, v_cols * itemsize, target_block_bytes)
    nt1 = pl.cdiv(v_rows, rt1)

    partials = pl.pallas_call(
        partial(_sumsq_kernel, total_rows=v_rows, row_tile=rt1),
        out_shape=jax.ShapeDtypeStruct((nt1, 8, 128), jnp.float32),
        grid=(nt1,),
        in_specs=[pl.BlockSpec((rt1, v_cols), lambda i: (i, 0))],
        out_specs=pl.BlockSpec((1, 8, 128), lambda i: (i, 0, 0)),
        compiler_params=pltpu.CompilerParams(
            dimension_semantics=("parallel",),
            vmem_limit_bytes=vmem_limit_bytes),
    )(xv)

    ssq = jnp.sum(partials)  # tiny (nt1 * 1024 f32), tree-reduced by XLA
    to_norm = jnp.sqrt(jnp.float32(desired_avg * features) / ssq).reshape(1)

    # ------------------ Pass 2: per-row normalization ------------------
    if features > 1:
        inv_nm1 = 1.0 / float(features - 1)
    else:
        inv_nm1 = float("nan")  # matches torch.std (unbiased) for a single element

    rt2 = _pick_row_tile(rows, features * itemsize, target_block_bytes)
    nt2 = pl.cdiv(rows, rt2)

    out = pl.pallas_call(
        partial(_norm_kernel, inv_nm1=inv_nm1, eps=float(eps)),
        out_shape=jax.ShapeDtypeStruct((rows, features), x.dtype),
        grid=(nt2,),
        in_specs=[pl.BlockSpec(memory_space=pltpu.MemorySpace.SMEM),  # to_norm scalar
                  pl.BlockSpec((rt2, features), lambda i: (i, 0))],
        out_specs=pl.BlockSpec((rt2, features), lambda i: (i, 0)),
        compiler_params=pltpu.CompilerParams(
            dimension_semantics=("parallel",),
            vmem_limit_bytes=vmem_limit_bytes),
    )(to_norm, x2)

    return out.reshape(orig_shape)


def _reference(x, desired_avg, eps=1e-6):
    features = x.shape[-1]
    to_norm = jnp.sqrt(desired_avg * features / jnp.sum(x.astype(jnp.float32) ** 2))
    mean = x.mean(-1, keepdims=True)
    std = jnp.std(x, axis=-1, ddof=1, keepdims=True)  # torch.std: unbiased
    return to_norm * (x - mean) / (std + eps)


if __name__ == "__main__":
    # Small shapes implied by the module: (batch=2, seq=8, features=32).
    B, S, F = 2, 8, 32
    desired_avg = 0.5
    eps = 1e-6

    key = jax.random.PRNGKey(0)
    x = jax.random.normal(key, (B, S, F), dtype=jnp.float32)

    out = layer_norm_avg(x, desired_avg, eps=eps)
    out = jax.block_until_ready(out)

    ref = _reference(x, desired_avg, eps=eps)
    np.testing.assert_allclose(np.asarray(out), np.asarray(ref), rtol=1e-5, atol=1e-5)

    print("KERNEL_OK")
</pallas_src>

<mosaic_0001>
module attributes {stable_mosaic.version = 11 : i64} {
  func.func @_sumsq_kernel(%arg0: i32, %arg1: memref<4x128xf32, #tpu.memory_space<vmem>>, %arg2: memref<1x8x128xf32, #tpu.memory_space<vmem>>) attributes {dimension_semantics = [#tpu.dimension_semantics<parallel>], iteration_bounds = array<i64: 1>, scalar_prefetch = 0 : i64, scratch_operands = 0 : i64, tpu.core_type = #tpu.core_type<tc>, window_params = [{transform_indices = @transform_0, window_bounds = array<i64: 4, 128>}, {transform_indices = @transform_1, window_bounds = array<i64: 1, 8, 128>}]} {
    %c0 = arith.constant 0 : index
    %c0_0 = arith.constant 0 : index
    %0 = vector.load %arg1[%c0, %c0_0] : memref<4x128xf32, #tpu.memory_space<vmem>>, vector<4x128xf32>
    %c4_i32 = arith.constant 4 : i32
    %1 = arith.muli %arg0, %c4_i32 : i32
    %2 = tpu.iota {dimensions = array<i32: 0>} : vector<4x128xi32>
    %3 = vector.broadcast %1 : i32 to vector<4x128xi32>
    %4 = arith.addi %3, %2 : vector<4x128xi32>
    %c4_i32_1 = arith.constant 4 : i32
    %5 = vector.broadcast %c4_i32_1 : i32 to vector<4x128xi32>
    %6 = arith.cmpi slt, %4, %5 : vector<4x128xi32>
    %cst = arith.constant 0.000000e+00 : f32
    %7 = vector.broadcast %cst : f32 to vector<4x128xf32>
    %8 = arith.select %6, %0, %7 : vector<4x128xi1>, vector<4x128xf32>
    %9 = arith.mulf %8, %8 : vector<4x128xf32>
    %10 = vector.shape_cast %9 : vector<4x128xf32> to vector<1x4x128xf32>
    %cst_2 = arith.constant dense<0.000000e+00> : vector<1xf32>
    %11 = vector.multi_reduction <add>, %10, %cst_2 [1, 2] : vector<1x4x128xf32> to vector<1xf32>
    %12 = vector.shape_cast %11 : vector<1xf32> to vector<1x1x1xf32>
    %13 = vector.extract %12[0, 0, 0] : f32 from vector<1x1x1xf32>
    %14 = tpu.iota {dimensions = array<i32: 1>} : vector<1x8x128xi32>
    %15 = tpu.iota {dimensions = array<i32: 2>} : vector<1x8x128xi32>
    %c0_i32 = arith.constant 0 : i32
    %16 = vector.broadcast %c0_i32 : i32 to vector<1x8x128xi32>
    %17 = arith.cmpi eq, %14, %16 : vector<1x8x128xi32>
    %c0_i32_3 = arith.constant 0 : i32
    %18 = vector.broadcast %c0_i32_3 : i32 to vector<1x8x128xi32>
    %19 = arith.cmpi eq, %15, %18 : vector<1x8x128xi32>
    %20 = arith.andi %17, %19 : vector<1x8x128xi1>
    %cst_4 = arith.constant 0.000000e+00 : f32
    %21 = vector.broadcast %13 : f32 to vector<1x8x128xf32>
    %22 = vector.broadcast %cst_4 : f32 to vector<1x8x128xf32>
    %23 = arith.select %20, %21, %22 : vector<1x8x128xi1>, vector<1x8x128xf32>
    %c0_5 = arith.constant 0 : index
    %c0_6 = arith.constant 0 : index
    %c0_7 = arith.constant 0 : index
    %24 = vector.load %arg2[%c0_5, %c0_6, %c0_7] : memref<1x8x128xf32, #tpu.memory_space<vmem>>, vector<1x8x128xf32>
    tpu.vector_store %arg2[%c0_5, %c0_6, %c0_7], %23 {strides = array<i32>} : memref<1x8x128xf32, #tpu.memory_space<vmem>>, vector<1x8x128xf32>,
    return
  }
  func.func @transform_0(%arg0: i32) -> (i32, i32) {
    %c0_i32 = arith.constant 0 : i32
    %c0_i32_0 = arith.constant 0 : i32
    return %arg0, %c0_i32 : i32, i32
  }
  func.func @transform_1(%arg0: i32) -> (i32, i32, i32) {
    %c0_i32 = arith.constant 0 : i32
    %c0_i32_0 = arith.constant 0 : i32
    %c0_i32_1 = arith.constant 0 : i32
    return %arg0, %c0_i32, %c0_i32_0 : i32, i32, i32
  }
}

</mosaic_0001>

<llo_original>
// kernel: tpu_custom_call.1
$region0: #{tpu_custom_call.1}
  #allocation0 [shape = 'u32[]', space=smem, size = 0x4, offset = 0x4, fixed_abs, tag = 'smem constant byte address 0x4 - core index']
  #allocation1 [shape = 'u32[144,128]{1,0:T(1,128)}', space=vmem, size = 0x12000, scoped, tag = 'internal scratch']
  %s0 = inlined_call_operand.hbm [shape: f32[4,128], index: 0, kind: input, shape index: {}]
  %s1 = inlined_call_operand.hbm [shape: f32[1,8,128], index: 1, kind: output, shape index: {}]
  %s2 = sld [smem:[#allocation0]]
  $region18: #{tpu_custom_call.1} parent=0
    _
  %s4 = ssub.s32 1, %s2
  %s5 = scalar_select 0, %s4, %s2
  $region1: #{tpu_custom_call.1} parent=0
    #allocation2 [shape = 'u8[2048]{0}', space=vmem, size = 0x800, scoped, tag = 'input window, operand 0, single buffered']
    #allocation3 [shape = 's32[1]{0}', space=sflag, size = 0x4, scoped, tag = 'scoped memory for tpu_custom_call.1']
    #allocation4 [shape = 's32[1]{0}', space=sflag, size = 0x4, scoped, tag = 'scoped memory for tpu_custom_call.1']
    #allocation5 [shape = 'u8[4096]{0}', space=vmem, size = 0x1000, scoped, tag = 'output window, operand 0, single buffered']
    %6 = vsyncpa [#allocation3], 0
    %7 = vsyncpa [#allocation4], 0
    // Predicated region
    $region2: #{tpu_custom_call.1} parent=1 // pred_check
      _
    $region3: #{tpu_custom_call.1} parent=1 // pred_check_branch
      %9 = sbr.rel (0) target = $region5
    $region4: #{tpu_custom_call.1} parent=1 // pred_region
      %s11 = ssub.s32 64, 64
      %12 = vsyncadd [#allocation3], %s11
      %s14 = sshll.u32 [#allocation2], 4
      %s15 = int_to_ptr.vmem [resolvable:$true] %s14
      %17 = dma.hbm_to_vmem [thread:$0]  %s0, 64, %s15, [#allocation3]
    $region5: #{tpu_custom_call.1} parent=1 // pred_fallthru
      _
    // Predicated region
    $region6: #{tpu_custom_call.1} parent=1 // pred_check
      _
    $region7: #{tpu_custom_call.1} parent=1 // pred_check_branch
      %19 = sbr.rel (0) target = $region9
    $region8: #{tpu_custom_call.1} parent=1 // pred_region
      %20 = dma.done [#allocation3], 64
    $region9: #{tpu_custom_call.1} parent=1 // pred_fallthru
      _
    %v21 = vld [vmem:[#allocation2] sm:$0xf]
    %s22 = smul.u32 0, 4
    %v23 = vlaneseq
    %v24 = vshrl.u32 %v23, 7
    %v25 = vstv %s22
    %v26 = vadd.s32 %v25, %v24
    %vm27 = vcmp.lt.s32.totalorder %v26, 4
    %v28 = vsel %vm27, %v21, 0.0
    %v29 = vmul.f32 %v28, %v28
    %vm30 = vcmask 1043456
    %v31 = vsel %vm30, %v29, 0.0
    %32 = vadd.xlane.f32.xlu0 %v31
    %v33 = vpop.xlane.xlu0 %32
    %v34 = vrot.slane %v33, 4
    %v35 = vadd.f32 %v33, %v34
    %v36 = vrot.slane %v35, 2
    %v37 = vadd.f32 %v35, %v36
    %v38 = vrot.slane %v37, 1
    %v39 = vadd.f32 %v37, %v38
    %s40 = vtos %v39
    %v41 = vlaneseq
    %v42 = vand.u32 %v41, 127
    %vm43 = vcmp.eq.s32.totalorder %v24, 0
    %vm44 = vcmp.eq.s32.totalorder %v42, 0
    %vm45 = vmand %vm43, %vm44
    %v46 = vstv %s40
    %v47 = vsel %vm45, %v46, 0.0
    %48 = vst [vmem:[#allocation5] sm:$0xff] %v47
    // Predicated region
    $region10: #{tpu_custom_call.1} parent=1 // pred_check
      _
    $region11: #{tpu_custom_call.1} parent=1 // pred_check_branch
      %50 = sbr.rel (0) target = $region13
    $region12: #{tpu_custom_call.1} parent=1 // pred_region
      %s52 = ssub.s32 128, 128
      %53 = vsyncadd [#allocation4], %s52
      %s55 = sshll.u32 [#allocation5], 4
      %s56 = int_to_ptr.vmem [resolvable:$true] %s55
      %58 = dma.vmem_to_hbm [thread:$0]  %s56, 128, %s1, [#allocation4]
    $region13: #{tpu_custom_call.1} parent=1 // pred_fallthru
      _
    // Predicated region
    $region14: #{tpu_custom_call.1} parent=1 // pred_check
      _
    $region15: #{tpu_custom_call.1} parent=1 // pred_check_branch
      %60 = sbr.rel (0) target = $region17
    $region16: #{tpu_custom_call.1} parent=1 // pred_region
      %61 = dma.done [#allocation4], 128
    $region17: #{tpu_custom_call.1} parent=1 // pred_fallthru
      _
    %62 = vsyncpa [#allocation3], 1
    %63 = vsyncpa [#allocation4], 1

</llo_original>
